<compile_context>
chip_gen: v7x
topology: tpu7x:2x2x1
jax: 0.10.0
libtpu: 0.0.40
codegen_flags: <defaults>
</compile_context>

<pallas_src>
import math

import jax
import jax.numpy as jnp
from jax.experimental import pallas as pl
from jax.experimental.pallas import tpu as pltpu


def _droppath_kernel(s_ref, x_ref, o_ref):
    # s_ref: (tr, 1) f32 per-row scale (0.0 or 1/keep_prob), broadcast over
    # the lane dim.  Pure VPU broadcast-multiply; mem-bound.
    o_ref[...] = (x_ref[...].astype(jnp.float32) * s_ref[...]).astype(o_ref.dtype)


def _pick_cols(padded_per_sample: int) -> int:
    """Largest multiple-of-128 divisor of the (128-aligned) per-sample length,
    capped at 2048 lanes so row-tiling always has room."""
    q = padded_per_sample // 128
    for k in range(min(q, 16), 0, -1):
        if q % k == 0:
            return 128 * k
    return 128  # unreachable (k=1 always divides)


def _pick_tr(total_rows: int, cols: int, itemsize: int) -> int:
    """Row tile: ~4 MiB blocks, rounded to the dtype sublane packing, and
    nudged to divide total_rows when that doesn't shrink the block too much."""
    packing = max(8, 8 * (4 // max(1, itemsize)))   # 8 f32, 16 bf16, 32 int8/fp8
    target_bytes = 4 * 1024 * 1024
    tr = max(packing, (target_bytes // (cols * itemsize)) // packing * packing)
    if tr >= total_rows:
        return total_rows                            # full extent: always legal
    if total_rows % tr != 0:
        floor_tr = max(packing, tr // 2)
        for cand in range(tr, floor_tr - 1, -packing):
            if total_rows % cand == 0:
                return cand                          # even tiling, no ragged tail
    return tr                                        # accept a ragged tail block


def drop_path(x: jax.Array, drop_prob: float, key: jax.Array,
              training: bool = True) -> jax.Array:
    """DropPath forward.  x: (B, ...) — per-sample keep mask broadcast over
    all non-batch dims."""
    if drop_prob == 0.0 or not training:
        return x  # identity path, matches the PyTorch early-return

    keep_prob = 1.0 - drop_prob
    B = x.shape[0]
    per_sample = math.prod(x.shape[1:])
    itemsize = x.dtype.itemsize

    # Per-sample mask = floor(keep_prob + U[0,1)); scale = mask / keep_prob.
    u = jax.random.uniform(key, (B,), dtype=jnp.float32)
    mask = jnp.floor(jnp.float32(keep_prob) + u)
    scale = mask / jnp.float32(keep_prob)                   # 0 or 1/keep_prob

    # Lane-dense layout: flatten per-sample, pad to a multiple of 128 if
    # needed, then fold batch into the row axis -> (total_rows, cols).
    pad = (-per_sample) % 128
    padded = per_sample + pad
    x2 = x.reshape(B, per_sample)
    if pad:
        x2 = jnp.pad(x2, ((0, 0), (0, pad)))

    cols = _pick_cols(padded)
    rows_per_sample = padded // cols
    total_rows = B * rows_per_sample
    tr = _pick_tr(total_rows, cols, itemsize)

    x2 = x2.reshape(total_rows, cols)
    scale_rows = jnp.repeat(scale, rows_per_sample).reshape(total_rows, 1)

    out2 = pl.pallas_call(
        _droppath_kernel,
        out_shape=jax.ShapeDtypeStruct((total_rows, cols), x.dtype),
        grid=(pl.cdiv(total_rows, tr),),
        in_specs=[
            pl.BlockSpec((tr, 1), lambda i: (i, 0)),        # per-row scale
            pl.BlockSpec((tr, cols), lambda i: (i, 0)),     # activations
        ],
        out_specs=pl.BlockSpec((tr, cols), lambda i: (i, 0)),
        compiler_params=pltpu.CompilerParams(
            dimension_semantics=("parallel",),
            vmem_limit_bytes=32 * 1024 * 1024,              # 4 x ~4 MiB blocks + slack
        ),
    )(scale_rows, x2)

    out = out2.reshape(B, padded)
    if pad:
        out = out[:, :per_sample]
    return out.reshape(x.shape)


if __name__ == "__main__":
    key = jax.random.PRNGKey(0)
    xkey, mkey, xkey2, mkey2 = jax.random.split(key, 4)

    drop_prob = 0.3
    keep_prob = 1.0 - drop_prob

    # --- Main test: ViT-style (B, N, D), 128-divisible per-sample size. ---
    B, N, D = 2, 8, 32
    x = jax.random.normal(xkey, (B, N, D), dtype=jnp.float32)

    out = jax.block_until_ready(drop_path(x, drop_prob, mkey, training=True))
    assert out.shape == x.shape and out.dtype == x.dtype
    for b in range(B):
        ob = out[b]
        is_zero = bool(jnp.all(ob == 0.0))
        is_scaled = bool(jnp.allclose(ob, x[b] / keep_prob, rtol=1e-5, atol=1e-6))
        assert is_zero or is_scaled, f"sample {b}: not a valid drop-path output"

    # --- Padding path: per-sample size not a multiple of 128. ---
    x_odd = jax.random.normal(xkey2, (2, 7, 5, 5), dtype=jnp.float32)
    out_odd = jax.block_until_ready(drop_path(x_odd, drop_prob, mkey2, training=True))
    assert out_odd.shape == x_odd.shape
    for b in range(x_odd.shape[0]):
        ob = out_odd[b]
        is_zero = bool(jnp.all(ob == 0.0))
        is_scaled = bool(jnp.allclose(ob, x_odd[b] / keep_prob, rtol=1e-5, atol=1e-6))
        assert is_zero or is_scaled, f"odd sample {b}: not a valid drop-path output"

    # --- Identity paths: eval mode and drop_prob == 0. ---
    out_eval = jax.block_until_ready(drop_path(x, drop_prob, mkey, training=False))
    assert bool(jnp.array_equal(out_eval, x))
    out_p0 = jax.block_until_ready(drop_path(x, 0.0, mkey, training=True))
    assert bool(jnp.array_equal(out_p0, x))

    print("KERNEL_OK")
</pallas_src>

<mosaic_0001>
module attributes {stable_mosaic.version = 11 : i64} {
  func.func @_droppath_kernel(%arg0: i32, %arg1: memref<2x1xf32, #tpu.memory_space<vmem>>, %arg2: memref<2x256xf32, #tpu.memory_space<vmem>>, %arg3: memref<2x256xf32, #tpu.memory_space<vmem>>) attributes {dimension_semantics = [#tpu.dimension_semantics<parallel>], iteration_bounds = array<i64: 1>, scalar_prefetch = 0 : i64, scratch_operands = 0 : i64, tpu.core_type = #tpu.core_type<tc>, window_params = [{transform_indices = @transform_0, window_bounds = array<i64: 2, 1>}, {transform_indices = @transform_1, window_bounds = array<i64: 2, 256>}, {transform_indices = @transform_2, window_bounds = array<i64: 2, 256>}]} {
    %c0 = arith.constant 0 : index
    %c0_0 = arith.constant 0 : index
    %0 = vector.load %arg2[%c0, %c0_0] : memref<2x256xf32, #tpu.memory_space<vmem>>, vector<2x256xf32>
    %c0_1 = arith.constant 0 : index
    %c0_2 = arith.constant 0 : index
    %1 = vector.load %arg1[%c0_1, %c0_2] : memref<2x1xf32, #tpu.memory_space<vmem>>, vector<2x1xf32>
    %2 = vector.broadcast %1 : vector<2x1xf32> to vector<2x256xf32>
    %3 = arith.mulf %0, %2 : vector<2x256xf32>
    %c0_3 = arith.constant 0 : index
    %c0_4 = arith.constant 0 : index
    %4 = vector.load %arg3[%c0_3, %c0_4] : memref<2x256xf32, #tpu.memory_space<vmem>>, vector<2x256xf32>
    tpu.vector_store %arg3[%c0_3, %c0_4], %3 {strides = array<i32>} : memref<2x256xf32, #tpu.memory_space<vmem>>, vector<2x256xf32>,
    return
  }
  func.func @transform_0(%arg0: i32) -> (i32, i32) {
    %c0_i32 = arith.constant 0 : i32
    %c0_i32_0 = arith.constant 0 : i32
    return %arg0, %c0_i32 : i32, i32
  }
  func.func @transform_1(%arg0: i32) -> (i32, i32) {
    %c0_i32 = arith.constant 0 : i32
    %c0_i32_0 = arith.constant 0 : i32
    return %arg0, %c0_i32 : i32, i32
  }
  func.func @transform_2(%arg0: i32) -> (i32, i32) {
    %c0_i32 = arith.constant 0 : i32
    %c0_i32_0 = arith.constant 0 : i32
    return %arg0, %c0_i32 : i32, i32
  }
}

</mosaic_0001>

<llo_original>
// kernel: tpu_custom_call.1
$region0: #{tpu_custom_call.1}
  #allocation0 [shape = 'u32[]', space=smem, size = 0x4, offset = 0x4, fixed_abs, tag = 'smem constant byte address 0x4 - core index']
  #allocation1 [shape = 'u32[144,128]{1,0:T(1,128)}', space=vmem, size = 0x12000, scoped, tag = 'internal scratch']
  %s0 = inlined_call_operand.vmem [shape: f32[2,1], index: 0, kind: input, shape index: {}]
  %s1 = inlined_call_operand.vmem [shape: f32[2,256], index: 1, kind: input, shape index: {}]
  %s2 = inlined_call_operand.hbm [shape: f32[2,256], index: 2, kind: output, shape index: {}]
  %s3 = sld [smem:[#allocation0]]
  $region18: #{tpu_custom_call.1} parent=0
    _
  %s5 = ssub.s32 1, %s3
  %s6 = scalar_select 0, %s5, %s3
  $region1: #{tpu_custom_call.1} parent=0
    #allocation2 [shape = 'u8[2048]{0}', space=vmem, size = 0x800, scoped, tag = 'output window, operand 0, single buffered']
    #allocation3 [shape = 's32[1]{0}', space=sflag, size = 0x4, scoped, tag = 'scoped memory for tpu_custom_call.1']
    %7 = vsyncpa [#allocation3], 0
    // Predicated region
    $region2: #{tpu_custom_call.1} parent=1 // pred_check
      _
    $region3: #{tpu_custom_call.1} parent=1 // pred_check_branch
      %9 = sbr.rel (0) target = $region5
    $region4: #{tpu_custom_call.1} parent=1 // pred_region
      _
    $region5: #{tpu_custom_call.1} parent=1 // pred_fallthru
      _
    // Predicated region
    $region6: #{tpu_custom_call.1} parent=1 // pred_check
      _
    $region7: #{tpu_custom_call.1} parent=1 // pred_check_branch
      %11 = sbr.rel (0) target = $region9
    $region8: #{tpu_custom_call.1} parent=1 // pred_region
      _
    $region9: #{tpu_custom_call.1} parent=1 // pred_fallthru
      _
    %v12 = vld [vmem:[%s1] sm:$0xf]
    %v13 = vld [vmem:[%s0] sm:$0x3]
    %15 = vset.pattern.permute.xlu0 0
    %16 = vperm.xlu0 %15, %v13
    %v17 = vpop.permute.xlu0 %16
    %v19 = vunpack.c.l.s4 269488144
    %v20 = vunpack.c.0.s8 %v19
    %v21 = vlaneseq
    %v22 = vshrl.u32 %v21, 7
    %v23 = vsub.s32 %v20, %v22
    %v24 = vrot.slane %v17, %v23
    %v26 = vmul.f32 %v12, %v24
    %27 = vst [vmem:[#allocation2] sm:$0xf] %v26
    // Predicated region
    $region10: #{tpu_custom_call.1} parent=1 // pred_check
      _
    $region11: #{tpu_custom_call.1} parent=1 // pred_check_branch
      %29 = sbr.rel (0) target = $region13
    $region12: #{tpu_custom_call.1} parent=1 // pred_region
      %s31 = ssub.s32 64, 64
      %32 = vsyncadd [#allocation3], %s31
      %s34 = sshll.u32 [#allocation2], 4
      %s35 = int_to_ptr.vmem [resolvable:$true] %s34
      %37 = dma.vmem_to_hbm [thread:$0]  %s35, 64, %s2, [#allocation3]
    $region13: #{tpu_custom_call.1} parent=1 // pred_fallthru
      _
    // Predicated region
    $region14: #{tpu_custom_call.1} parent=1 // pred_check
      _
    $region15: #{tpu_custom_call.1} parent=1 // pred_check_branch
      %39 = sbr.rel (0) target = $region17
    $region16: #{tpu_custom_call.1} parent=1 // pred_region
      %40 = dma.done [#allocation3], 64
    $region17: #{tpu_custom_call.1} parent=1 // pred_fallthru
      _
    %41 = vsyncpa [#allocation3], 1

</llo_original>
